<compile_context>
chip_gen: v6e
topology: v6e:2x2x1
jax: 0.10.0
libtpu: 0.0.40
codegen_flags: <defaults>
</compile_context>

<pallas_src>
import functools

import numpy as np
import jax
import jax.numpy as jnp
from jax.experimental import pallas as pl
from jax.experimental.pallas import tpu as pltpu


def _round_up(x, m):
    return (x + m - 1) // m * m


# ---------------------------------------------------------------------------
# Kernel
# ---------------------------------------------------------------------------
def _qnet_kernel(state_ref, action_ref, slab_ref, out_ref, *, layout):
    S = layout["S"]
    A = layout["A"]
    Hc = layout["Hc"]
    out_lanes = layout["out_lanes"]

    s = state_ref[...]                                    # (TB, S)
    a = action_ref[...]                                   # (TB, A)

    # Static slices of the resident parameter slab (all pre-transposed).
    w1s = slab_ref[pl.ds(layout["r_w1s"], S), :]          # (S,  Hc)
    w1a = slab_ref[pl.ds(layout["r_w1a"], A), :]          # (A,  Hc)
    b1 = slab_ref[pl.ds(layout["r_b1"], 1), :]            # (1,  Hc)
    w2 = slab_ref[pl.ds(layout["r_w2"], Hc), :]           # (Hc, Hc) block-diag
    w3 = slab_ref[pl.ds(layout["r_w3"], Hc), pl.ds(0, out_lanes)]  # (Hc, 128)

    # Layer 1 (both heads fused along the lane axis), concat done via two dots.
    h = jnp.dot(s, w1s, preferred_element_type=jnp.float32)
    h = h + jnp.dot(a, w1a, preferred_element_type=jnp.float32)
    h = jnp.maximum(h + b1, 0.0)          # col 2H becomes relu(1)=1: bias carrier

    # Layer 2 (block-diagonal over heads; bias folded into row 2H of w2).
    h = jnp.maximum(jnp.dot(h, w2, preferred_element_type=jnp.float32), 0.0)

    # Layer 3: q1 in lane 0, q2 in lane 1 (bias folded via the ones column).
    q = jnp.dot(h, w3, preferred_element_type=jnp.float32)
    out_ref[...] = q.astype(out_ref.dtype)


# ---------------------------------------------------------------------------
# Parameter packing (done once, outside the forward hot path)
# ---------------------------------------------------------------------------
def pack_qnetwork_params(params, num_inputs, num_actions, hidden_dim):
    """Pack the 12 PyTorch-style tensors into one lane-aligned f32 slab."""
    (w1, b1, w2, b2, w3, b3, w4, b4, w5, b5, w6, b6) = [
        np.asarray(p, np.float32) for p in params
    ]
    S, A, H = num_inputs, num_actions, hidden_dim
    Hc = _round_up(2 * H + 1, 128)        # fused hidden width + ones column
    Sp8 = _round_up(S, 8)
    Ap8 = _round_up(A, 8)

    r_w1s = 0
    r_w1a = Sp8
    r_b1 = Sp8 + Ap8
    r_w2 = r_b1 + 8
    r_w3 = r_w2 + Hc
    rows = r_w3 + Hc                      # multiple of 8 by construction

    slab = np.zeros((rows, Hc), np.float32)
    # Layer 1, state-input rows (pre-transposed, heads side by side on lanes).
    slab[r_w1s:r_w1s + S, 0:H] = w1[:, :S].T
    slab[r_w1s:r_w1s + S, H:2 * H] = w4[:, :S].T
    # Layer 1, action-input rows.
    slab[r_w1a:r_w1a + A, 0:H] = w1[:, S:].T
    slab[r_w1a:r_w1a + A, H:2 * H] = w4[:, S:].T
    # Layer 1 fused bias row; lane 2H seeds the "ones" column.
    slab[r_b1, 0:H] = b1
    slab[r_b1, H:2 * H] = b4
    slab[r_b1, 2 * H] = 1.0
    # Layer 2: block-diagonal over heads, biases folded into row 2H.
    slab[r_w2:r_w2 + H, 0:H] = w2.T
    slab[r_w2 + H:r_w2 + 2 * H, H:2 * H] = w5.T
    slab[r_w2 + 2 * H, 0:H] = b2
    slab[r_w2 + 2 * H, H:2 * H] = b5
    slab[r_w2 + 2 * H, 2 * H] = 1.0       # propagate the ones column
    # Layer 3: q1 -> lane 0, q2 -> lane 1, biases folded into row 2H.
    slab[r_w3:r_w3 + H, 0] = w3[0, :]
    slab[r_w3 + H:r_w3 + 2 * H, 1] = w6[0, :]
    slab[r_w3 + 2 * H, 0] = b3[0]
    slab[r_w3 + 2 * H, 1] = b6[0]

    layout = dict(S=S, A=A, H=H, Hc=Hc, r_w1s=r_w1s, r_w1a=r_w1a, r_b1=r_b1,
                  r_w2=r_w2, r_w3=r_w3, out_lanes=128)
    return jnp.asarray(slab), layout


# ---------------------------------------------------------------------------
# Wrapper
# ---------------------------------------------------------------------------
def qnetwork_forward(state, action, slab, layout):
    """Twin-Q forward. Returns (q1, q2), each (B, 1) float32."""
    B = state.shape[0]
    S, A = layout["S"], layout["A"]
    out_lanes = layout["out_lanes"]

    # Tile the batch when it divides 128; otherwise one full-batch block
    # (full-array block dims are exempt from the (8,128) rule).
    TB = 128 if (B % 128 == 0) else B
    grid = (B // TB,)

    kernel = functools.partial(_qnet_kernel, layout=layout)

    out = pl.pallas_call(
        kernel,
        out_shape=jax.ShapeDtypeStruct((B, out_lanes), jnp.float32),
        grid=grid,
        in_specs=[
            pl.BlockSpec((TB, S), lambda i: (i, 0)),
            pl.BlockSpec((TB, A), lambda i: (i, 0)),
            pl.BlockSpec(slab.shape, lambda i: (0, 0)),   # weights stay resident
        ],
        out_specs=pl.BlockSpec((TB, out_lanes), lambda i: (i, 0)),
        compiler_params=pltpu.CompilerParams(
            dimension_semantics=("parallel",)),
    )(state, action, slab)

    q1 = out[:, 0:1]
    q2 = out[:, 1:2]
    return q1, q2


# ---------------------------------------------------------------------------
# Init + pure-JAX reference
# ---------------------------------------------------------------------------
def init_qnetwork_params(key, num_inputs, num_actions, hidden_dim):
    """Deterministic PyTorch-style (uniform +/- 1/sqrt(fan_in)) init."""
    d_in = num_inputs + num_actions

    def linear(key, fan_in, fan_out):
        kw, kb = jax.random.split(key)
        bound = 1.0 / jnp.sqrt(float(fan_in))
        w = jax.random.uniform(kw, (fan_out, fan_in), jnp.float32, -bound, bound)
        b = jax.random.uniform(kb, (fan_out,), jnp.float32, -bound, bound)
        return w, b

    keys = jax.random.split(key, 6)
    w1, b1 = linear(keys[0], d_in, hidden_dim)
    w2, b2 = linear(keys[1], hidden_dim, hidden_dim)
    w3, b3 = linear(keys[2], hidden_dim, 1)
    w4, b4 = linear(keys[3], d_in, hidden_dim)
    w5, b5 = linear(keys[4], hidden_dim, hidden_dim)
    w6, b6 = linear(keys[5], hidden_dim, 1)
    return (w1, b1, w2, b2, w3, b3, w4, b4, w5, b5, w6, b6)


def _reference_forward(state, action, params):
    (w1, b1, w2, b2, w3, b3, w4, b4, w5, b5, w6, b6) = params
    x = jnp.concatenate([state, action], axis=1)
    h = jax.nn.relu(x @ w1.T + b1)
    h = jax.nn.relu(h @ w2.T + b2)
    q1 = h @ w3.T + b3
    g = jax.nn.relu(x @ w4.T + b4)
    g = jax.nn.relu(g @ w5.T + b5)
    q2 = g @ w6.T + b6
    return q1, q2


if __name__ == "__main__":
    key = jax.random.PRNGKey(0)
    k_params, k_state, k_action, k_state2, k_action2 = jax.random.split(key, 5)

    num_inputs = 8
    num_actions = 4
    hidden_dim = 32  # small, consistent with the module's MLP structure

    params = init_qnetwork_params(k_params, num_inputs, num_actions, hidden_dim)
    slab, layout = pack_qnetwork_params(params, num_inputs, num_actions, hidden_dim)

    # Small-batch check (single-block path).
    batch = 2
    state = jax.random.normal(k_state, (batch, num_inputs), jnp.float32)
    action = jax.random.normal(k_action, (batch, num_actions), jnp.float32)
    q1, q2 = qnetwork_forward(state, action, slab, layout)
    jax.block_until_ready((q1, q2))
    r1, r2 = _reference_forward(state, action, params)
    assert q1.shape == (batch, 1) and q2.shape == (batch, 1)
    assert jnp.allclose(q1, r1, atol=1e-4, rtol=1e-4)
    assert jnp.allclose(q2, r2, atol=1e-4, rtol=1e-4)

    # Training-size batch check (gridded / megacore-parallel path).
    big_batch = 256
    state_b = jax.random.normal(k_state2, (big_batch, num_inputs), jnp.float32)
    action_b = jax.random.normal(k_action2, (big_batch, num_actions), jnp.float32)
    q1b, q2b = qnetwork_forward(state_b, action_b, slab, layout)
    jax.block_until_ready((q1b, q2b))
    r1b, r2b = _reference_forward(state_b, action_b, params)
    assert jnp.allclose(q1b, r1b, atol=1e-4, rtol=1e-4)
    assert jnp.allclose(q2b, r2b, atol=1e-4, rtol=1e-4)

    print("KERNEL_OK")
</pallas_src>

<mosaic_0001>
module attributes {stable_mosaic.version = 11 : i64} {
  func.func @_qnet_kernel(%arg0: i32, %arg1: memref<2x8xf32, #tpu.memory_space<vmem>>, %arg2: memref<2x4xf32, #tpu.memory_space<vmem>>, %arg3: memref<280x128xf32, #tpu.memory_space<vmem>>, %arg4: memref<2x128xf32, #tpu.memory_space<vmem>>) attributes {dimension_semantics = [#tpu.dimension_semantics<parallel>], iteration_bounds = array<i64: 1>, scalar_prefetch = 0 : i64, scratch_operands = 0 : i64, tpu.core_type = #tpu.core_type<tc>, window_params = [{transform_indices = @transform_0, window_bounds = array<i64: 2, 8>}, {transform_indices = @transform_1, window_bounds = array<i64: 2, 4>}, {pipeline_mode = #tpu.pipeline_mode<synchronous>, transform_indices = @transform_2, window_bounds = array<i64: 280, 128>}, {transform_indices = @transform_3, window_bounds = array<i64: 2, 128>}]} {
    %c0 = arith.constant 0 : index
    %c0_0 = arith.constant 0 : index
    %0 = vector.load %arg1[%c0, %c0_0] : memref<2x8xf32, #tpu.memory_space<vmem>>, vector<2x8xf32>
    %c0_1 = arith.constant 0 : index
    %c0_2 = arith.constant 0 : index
    %1 = vector.load %arg2[%c0_1, %c0_2] : memref<2x4xf32, #tpu.memory_space<vmem>>, vector<2x4xf32>
    %c0_3 = arith.constant 0 : index
    %c0_4 = arith.constant 0 : index
    %2 = vector.load %arg3[%c0_3, %c0_4] : memref<280x128xf32, #tpu.memory_space<vmem>>, vector<8x128xf32>
    %c8 = arith.constant 8 : index
    %c0_5 = arith.constant 0 : index
    %3 = vector.load %arg3[%c8, %c0_5] : memref<280x128xf32, #tpu.memory_space<vmem>>, vector<4x128xf32>
    %c16 = arith.constant 16 : index
    %c0_6 = arith.constant 0 : index
    %4 = vector.load %arg3[%c16, %c0_6] : memref<280x128xf32, #tpu.memory_space<vmem>>, vector<1x128xf32>
    %c24 = arith.constant 24 : index
    %c0_7 = arith.constant 0 : index
    %5 = vector.load %arg3[%c24, %c0_7] : memref<280x128xf32, #tpu.memory_space<vmem>>, vector<128x128xf32>
    %c152 = arith.constant 152 : index
    %c0_8 = arith.constant 0 : index
    %6 = vector.load %arg3[%c152, %c0_8] : memref<280x128xf32, #tpu.memory_space<vmem>>, vector<128x128xf32>
    %cst = arith.constant dense<0.000000e+00> : vector<2x128xf32>
    %7 = tpu.matmul %0, %2, %cst {dimension_numbers = #tpu.dot_dimension_numbers<[1], [0], [0], [1], [0, 0, 1, 1], [], []>} : vector<2x8xf32>, vector<8x128xf32>, vector<2x128xf32> -> vector<2x128xf32>
    %cst_9 = arith.constant dense<0.000000e+00> : vector<2x128xf32>
    %8 = tpu.matmul %1, %3, %cst_9 {dimension_numbers = #tpu.dot_dimension_numbers<[1], [0], [0], [1], [0, 0, 1, 1], [], []>} : vector<2x4xf32>, vector<4x128xf32>, vector<2x128xf32> -> vector<2x128xf32>
    %9 = arith.addf %7, %8 : vector<2x128xf32>
    %10 = vector.broadcast %4 : vector<1x128xf32> to vector<2x128xf32>
    %11 = arith.addf %9, %10 : vector<2x128xf32>
    %cst_10 = arith.constant 0.000000e+00 : f32
    %12 = vector.broadcast %cst_10 : f32 to vector<2x128xf32>
    %13 = arith.maximumf %11, %12 : vector<2x128xf32>
    %cst_11 = arith.constant dense<0.000000e+00> : vector<2x128xf32>
    %14 = tpu.matmul %13, %5, %cst_11 {dimension_numbers = #tpu.dot_dimension_numbers<[1], [0], [0], [1], [0, 0, 1, 1], [], []>} : vector<2x128xf32>, vector<128x128xf32>, vector<2x128xf32> -> vector<2x128xf32>
    %cst_12 = arith.constant 0.000000e+00 : f32
    %15 = vector.broadcast %cst_12 : f32 to vector<2x128xf32>
    %16 = arith.maximumf %14, %15 : vector<2x128xf32>
    %cst_13 = arith.constant dense<0.000000e+00> : vector<2x128xf32>
    %17 = tpu.matmul %16, %6, %cst_13 {dimension_numbers = #tpu.dot_dimension_numbers<[1], [0], [0], [1], [0, 0, 1, 1], [], []>} : vector<2x128xf32>, vector<128x128xf32>, vector<2x128xf32> -> vector<2x128xf32>
    %c0_14 = arith.constant 0 : index
    %c0_15 = arith.constant 0 : index
    %18 = vector.load %arg4[%c0_14, %c0_15] : memref<2x128xf32, #tpu.memory_space<vmem>>, vector<2x128xf32>
    tpu.vector_store %arg4[%c0_14, %c0_15], %17 {strides = array<i32>} : memref<2x128xf32, #tpu.memory_space<vmem>>, vector<2x128xf32>,
    return
  }
  func.func @transform_0(%arg0: i32) -> (i32, i32) {
    %c0_i32 = arith.constant 0 : i32
    %c0_i32_0 = arith.constant 0 : i32
    return %arg0, %c0_i32 : i32, i32
  }
  func.func @transform_1(%arg0: i32) -> (i32, i32) {
    %c0_i32 = arith.constant 0 : i32
    %c0_i32_0 = arith.constant 0 : i32
    return %arg0, %c0_i32 : i32, i32
  }
  func.func @transform_2(%arg0: i32) -> (i32, i32) {
    %c0_i32 = arith.constant 0 : i32
    %c0_i32_0 = arith.constant 0 : i32
    %c0_i32_1 = arith.constant 0 : i32
    return %c0_i32, %c0_i32_0 : i32, i32
  }
  func.func @transform_3(%arg0: i32) -> (i32, i32) {
    %c0_i32 = arith.constant 0 : i32
    %c0_i32_0 = arith.constant 0 : i32
    return %arg0, %c0_i32 : i32, i32
  }
}

</mosaic_0001>

<llo_original>
// kernel: tpu_custom_call.1
$region0: #{tpu_custom_call.1}
  #allocation0 [shape = 'u32[]', space=smem, size = 0x4, offset = 0x4, fixed_abs, tag = 'smem constant byte address 0x4 - core index']
  #allocation1 [shape = 'u32[144,128]{1,0:T(1,128)}', space=vmem, size = 0x12000, scoped, tag = 'internal scratch']
  %s0 = inlined_call_operand.hbm [shape: f32[2,8], index: 0, kind: input, shape index: {}]
  %s1 = inlined_call_operand.hbm [shape: f32[2,4], index: 1, kind: input, shape index: {}]
  %s2 = inlined_call_operand.hbm [shape: f32[280,128], index: 2, kind: input, shape index: {}]
  %s3 = inlined_call_operand.hbm [shape: f32[2,128], index: 3, kind: output, shape index: {}]
  %s4 = sld [smem:[#allocation0]]
  $region34: #{tpu_custom_call.1} parent=0
    _
  %s6 = ssub.s32 1, %s4
  %s7 = scalar_select 0, %s6, %s4
  $region1: #{tpu_custom_call.1} parent=0
    #allocation2 [shape = 'u8[1024]{0}', space=vmem, size = 0x400, scoped, tag = 'input window, operand 0, single buffered']
    #allocation3 [shape = 's32[1]{0}', space=sflag, size = 0x4, scoped, tag = 'scoped memory for tpu_custom_call.1']
    #allocation4 [shape = 's32[1]{0}', space=sflag, size = 0x4, scoped, tag = 'scoped memory for tpu_custom_call.1']
    #allocation5 [shape = 'u8[1024]{0}', space=vmem, size = 0x400, scoped, tag = 'input window, operand 1, single buffered']
    #allocation6 [shape = 's32[1]{0}', space=sflag, size = 0x4, scoped, tag = 'scoped memory for tpu_custom_call.1']
    #allocation7 [shape = 'u8[143360]{0}', space=vmem, size = 0x23000, scoped, tag = 'input window, operand 2, single buffered']
    #allocation8 [shape = 'u8[1024]{0}', space=vmem, size = 0x400, scoped, tag = 'output window, operand 0, single buffered']
    %8 = vsyncpa [#allocation3], 0
    %9 = vsyncpa [#allocation6], 0
    %10 = vsyncpa [#allocation4], 0
    // Predicated region
    $region2: #{tpu_custom_call.1} parent=1 // pred_check
      _
    $region3: #{tpu_custom_call.1} parent=1 // pred_check_branch
      %12 = sbr.rel (0) target = $region5
    $region4: #{tpu_custom_call.1} parent=1 // pred_region
      %s14 = ssub.s32 32, 32
      %15 = vsyncadd [#allocation3], %s14
      %s17 = sshll.u32 [#allocation2], 4
      %s18 = int_to_ptr.vmem [resolvable:$true] %s17
      %20 = dma.hbm_to_vmem [thread:$0]  %s0, 32, %s18, [#allocation3]
    $region5: #{tpu_custom_call.1} parent=1 // pred_fallthru
      _
    // Predicated region
    $region6: #{tpu_custom_call.1} parent=1 // pred_check
      _
    $region7: #{tpu_custom_call.1} parent=1 // pred_check_branch
      %22 = sbr.rel (0) target = $region9
    $region8: #{tpu_custom_call.1} parent=1 // pred_region
      %s24 = ssub.s32 32, 32
      %25 = vsyncadd [#allocation6], %s24
      %s27 = sshll.u32 [#allocation5], 4
      %s28 = int_to_ptr.vmem [resolvable:$true] %s27
      %30 = dma.hbm_to_vmem [thread:$0]  %s1, 32, %s28, [#allocation6]
    $region9: #{tpu_custom_call.1} parent=1 // pred_fallthru
      _
    // Predicated region
    $region10: #{tpu_custom_call.1} parent=1 // pred_check
      _
    $region11: #{tpu_custom_call.1} parent=1 // pred_check_branch
      %32 = sbr.rel (0) target = $region13
    $region12: #{tpu_custom_call.1} parent=1 // pred_region
      %s34 = ssub.s32 4480, 4480
      %35 = vsyncadd [#allocation6], %s34
      %s36 = sshll.u32 [#allocation7], 4
      %s37 = int_to_ptr.vmem [resolvable:$true] %s36
      %42 = dma.hbm_to_vmem [thread:$0]  %s2, 4480, %s37, [#allocation6], 128, 128, 8
    $region13: #{tpu_custom_call.1} parent=1 // pred_fallthru
      _
    // Predicated region
    $region14: #{tpu_custom_call.1} parent=1 // pred_check
      _
    $region15: #{tpu_custom_call.1} parent=1 // pred_check_branch
      %44 = sbr.rel (0) target = $region17
    $region16: #{tpu_custom_call.1} parent=1 // pred_region
      %45 = dma.done [#allocation3], 32
    $region17: #{tpu_custom_call.1} parent=1 // pred_fallthru
      _
    // Predicated region
    $region18: #{tpu_custom_call.1} parent=1 // pred_check
      _
    $region19: #{tpu_custom_call.1} parent=1 // pred_check_branch
      %47 = sbr.rel (0) target = $region21
    $region20: #{tpu_custom_call.1} parent=1 // pred_region
      %48 = dma.done [#allocation6], 32
    $region21: #{tpu_custom_call.1} parent=1 // pred_fallthru
      _
    // Predicated region
    $region22: #{tpu_custom_call.1} parent=1 // pred_check
      _
    $region23: #{tpu_custom_call.1} parent=1 // pred_check_branch
      %50 = sbr.rel (0) target = $region25
    $region24: #{tpu_custom_call.1} parent=1 // pred_region
      %51 = dma.done [#allocation6], 4480
    $region25: #{tpu_custom_call.1} parent=1 // pred_fallthru
      _
    %v52 = vld [vmem:[#allocation2] sm:$0x3]
    %v53 = vld [vmem:[#allocation5] sm:$0x3]
    %v54 = vld [vmem:[#allocation7] sm:$0xff]
    %v55 = vld [vmem:[#allocation7 + $0x8] sm:$0xf]
    %v56 = vld [vmem:[#allocation7 + $0x10] sm:$0x1]
    %v57 = vld [vmem:[#allocation7 + $0x18] sm:$0xff]
    %v58 = vld [vmem:[#allocation7 + $0x20] sm:$0xff]
    %v59 = vld [vmem:[#allocation7 + $0x28] sm:$0xff]
    %v60 = vld [vmem:[#allocation7 + $0x30] sm:$0xff]
    %v61 = vld [vmem:[#allocation7 + $0x38] sm:$0xff]
    %v62 = vld [vmem:[#allocation7 + $0x40] sm:$0xff]
    %v63 = vld [vmem:[#allocation7 + $0x48] sm:$0xff]
    %v64 = vld [vmem:[#allocation7 + $0x50] sm:$0xff]
    %v65 = vld [vmem:[#allocation7 + $0x58] sm:$0xff]
    %v66 = vld [vmem:[#allocation7 + $0x60] sm:$0xff]
    %v67 = vld [vmem:[#allocation7 + $0x68] sm:$0xff]
    %v68 = vld [vmem:[#allocation7 + $0x70] sm:$0xff]
    %v69 = vld [vmem:[#allocation7 + $0x78] sm:$0xff]
    %v70 = vld [vmem:[#allocation7 + $0x80] sm:$0xff]
    %v71 = vld [vmem:[#allocation7 + $0x88] sm:$0xff]
    %v72 = vld [vmem:[#allocation7 + $0x90] sm:$0xff]
    %v73 = vld [vmem:[#allocation7 + $0x98] sm:$0xff]
    %v74 = vld [vmem:[#allocation7 + $0xa0] sm:$0xff]
    %v75 = vld [vmem:[#allocation7 + $0xa8] sm:$0xff]
    %v76 = vld [vmem:[#allocation7 + $0xb0] sm:$0xff]
    %v77 = vld [vmem:[#allocation7 + $0xb8] sm:$0xff]
    %v78 = vld [vmem:[#allocation7 + $0xc0] sm:$0xff]
    %v79 = vld [vmem:[#allocation7 + $0xc8] sm:$0xff]
    %v80 = vld [vmem:[#allocation7 + $0xd0] sm:$0xff]
    %v81 = vld [vmem:[#allocation7 + $0xd8] sm:$0xff]
    %v82 = vld [vmem:[#allocation7 + $0xe0] sm:$0xff]
    %v83 = vld [vmem:[#allocation7 + $0xe8] sm:$0xff]
    %v84 = vld [vmem:[#allocation7 + $0xf0] sm:$0xff]
    %v85 = vld [vmem:[#allocation7 + $0xf8] sm:$0xff]
    %v86 = vld [vmem:[#allocation7 + $0x100] sm:$0xff]
    %v87 = vld [vmem:[#allocation7 + $0x108] sm:$0xff]
    %v88 = vld [vmem:[#allocation7 + $0x110] sm:$0xff]
    %vm89 = vcmask 31744
    %v91 = vsel %vm89, %v53, 0
    %vm93 = vcmask 1043456
    %v95 = vsel %vm93, %v55, 0
    %97 = vmatprep.subr.mxu0 0.0
    %98 = vmatpush1.msra.mxu0 0.0
    %99 = vmatprep.subr.mxu0 0.0
    %100 = vmatpush1.msra.mxu0 0.0
    %101 = vmatprep.subr.mxu0 0.0
    %102 = vmatpush1.msra.mxu0 0.0
    %103 = vmatprep.subr.mxu0 0.0
    %104 = vmatpush1.msra.mxu0 0.0
    %105 = vmatprep.subr.mxu0 0.0
    %106 = vmatpush1.msra.mxu0 0.0
    %107 = vmatprep.subr.mxu0 0.0
    %108 = vmatpush1.msra.mxu0 0.0
    %109 = vmatprep.subr.mxu0 0.0
    %110 = vmatpush1.msra.mxu0 0.0
    %111 = vmatprep.subr.mxu0 0.0
    %112 = vmatpush1.msra.mxu0 0.0
    %113 = vmatprep.subr.mxu0 0.0
    %114 = vmatpush1.msra.mxu0 0.0
    %115 = vmatprep.subr.mxu0 0.0
    %116 = vmatpush1.msra.mxu0 0.0
    %117 = vmatprep.subr.mxu0 0.0
    %118 = vmatpush1.msra.mxu0 0.0
    %119 = vmatprep.subr.mxu0 0.0
    %120 = vmatpush1.msra.mxu0 0.0
    %121 = vmatprep.subr.mxu0 0.0
    %122 = vmatpush1.msra.mxu0 0.0
    %123 = vmatprep.subr.mxu0 0.0
    %124 = vmatpush1.msra.mxu0 0.0
    %125 = vmatprep.subr.mxu0 0.0
    %126 = vmatpush1.msra.mxu0 0.0
    %127 = vmatprep.subr.mxu0 0.0
    %128 = vmatpush1.msra.mxu0 %v95
    %129 = vmatprep.subr.mxu0 0.0
    %130 = vmatpush2.msra.mxu0 0.0
    %131 = vmatprep.subr.mxu0 0.0
    %132 = vmatpush2.msra.mxu0 0.0
    %133 = vmatprep.subr.mxu0 0.0
    %134 = vmatpush2.msra.mxu0 0.0
    %135 = vmatprep.subr.mxu0 0.0
    %136 = vmatpush2.msra.mxu0 0.0
    %137 = vmatprep.subr.mxu0 0.0
    %138 = vmatpush2.msra.mxu0 0.0
    %139 = vmatprep.subr.mxu0 0.0
    %140 = vmatpush2.msra.mxu0 0.0
    %141 = vmatprep.subr.mxu0 0.0
    %142 = vmatpush2.msra.mxu0 0.0
    %143 = vmatprep.subr.mxu0 0.0
    %144 = vmatpush2.msra.mxu0 0.0
    %145 = vmatprep.subr.mxu0 0.0
    %146 = vmatpush2.msra.mxu0 0.0
    %147 = vmatprep.subr.mxu0 0.0
    %148 = vmatpush2.msra.mxu0 0.0
    %149 = vmatprep.subr.mxu0 0.0
    %150 = vmatpush2.msra.mxu0 0.0
    %151 = vmatprep.subr.mxu0 0.0
    %152 = vmatpush2.msra.mxu0 0.0
    %153 = vmatprep.subr.mxu0 0.0
    %154 = vmatpush2.msra.mxu0 0.0
    %155 = vmatprep.subr.mxu0 0.0
    %156 = vmatpush2.msra.mxu0 0.0
    %157 = vmatprep.subr.mxu0 0.0
    %158 = vmatpush2.msra.mxu0 0.0
    %159 = vmatprep.subr.mxu0 0.0
    %160 = vmatpush2.msra.mxu0 0.0
    %161 = vmatprep.mubr.f32.mxu0 0.0
    %162 = vmatmul.mubr.f32.gmra.mxu0 %v91
    %v163 = vpop.f32.mrf.mxu0
    %v164 = vadd.f32 0.0, %v163
    %v165 = vpop.f32.mrf.mxu0
    %166 = vdwg.mxu0
    %vm167 = vcmask 64512
    %v169 = vsel %vm167, %v52, 0
    %171 = vmatprep.subr.mxu0 0.0
    %172 = vmatpush1.msra.mxu0 0.0
    %173 = vmatprep.subr.mxu0 0.0
    %174 = vmatpush1.msra.mxu0 0.0
    %175 = vmatprep.subr.mxu0 0.0
    %176 = vmatpush1.msra.mxu0 0.0
    %177 = vmatprep.subr.mxu0 0.0
    %178 = vmatpush1.msra.mxu0 0.0
    %179 = vmatprep.subr.mxu0 0.0
    %180 = vmatpush1.msra.mxu0 0.0
    %181 = vmatprep.subr.mxu0 0.0
    %182 = vmatpush1.msra.mxu0 0.0
    %183 = vmatprep.subr.mxu0 0.0
    %184 = vmatpush1.msra.mxu0 0.0
    %185 = vmatprep.subr.mxu0 0.0
    %186 = vmatpush1.msra.mxu0 0.0
    %187 = vmatprep.subr.mxu0 0.0
    %188 = vmatpush1.msra.mxu0 0.0
    %189 = vmatprep.subr.mxu0 0.0
    %190 = vmatpush1.msra.mxu0 0.0
    %191 = vmatprep.subr.mxu0 0.0
    %192 = vmatpush1.msra.mxu0 0.0
    %193 = vmatprep.subr.mxu0 0.0
    %194 = vmatpush1.msra.mxu0 0.0
    %195 = vmatprep.subr.mxu0 0.0
    %196 = vmatpush1.msra.mxu0 0.0
    %197 = vmatprep.subr.mxu0 0.0
    %198 = vmatpush1.msra.mxu0 0.0
    %199 = vmatprep.subr.mxu0 0.0
    %200 = vmatpush1.msra.mxu0 0.0
    %201 = vmatprep.subr.mxu0 0.0
    %202 = vmatpush1.msra.mxu0 %v54
    %203 = vmatprep.subr.mxu0 0.0
    %204 = vmatpush2.msra.mxu0 0.0
    %205 = vmatprep.subr.mxu0 0.0
    %206 = vmatpush2.msra.mxu0 0.0
    %207 = vmatprep.subr.mxu0 0.0
    %208 = vmatpush2.msra.mxu0 0.0
    %209 = vmatprep.subr.mxu0 0.0
    %210 = vmatpush2.msra.mxu0 0.0
    %211 = vmatprep.subr.mxu0 0.0
    %212 = vmatpush2.msra.mxu0 0.0
    %213 = vmatprep.subr.mxu0 0.0
    %214 = vmatpush2.msra.mxu0 0.0
    %215 = vmatprep.subr.mxu0 0.0
    %216 = vmatpush2.msra.mxu0 0.0
    %217 = vmatprep.subr.mxu0 0.0
    %218 = vmatpush2.msra.mxu0 0.0
    %219 = vmatprep.subr.mxu0 0.0
    %220 = vmatpush2.msra.mxu0 0.0
    %221 = vmatprep.subr.mxu0 0.0
    %222 = vmatpush2.msra.mxu0 0.0
    %223 = vmatprep.subr.mxu0 0.0
    %224 = vmatpush2.msra.mxu0 0.0
    %225 = vmatprep.subr.mxu0 0.0
    %226 = vmatpush2.msra.mxu0 0.0
    %227 = vmatprep.subr.mxu0 0.0
    %228 = vmatpush2.msra.mxu0 0.0
    %229 = vmatprep.subr.mxu0 0.0
    %230 = vmatpush2.msra.mxu0 0.0
    %231 = vmatprep.subr.mxu0 0.0
    %232 = vmatpush2.msra.mxu0 0.0
    %233 = vmatprep.subr.mxu0 0.0
    %234 = vmatpush2.msra.mxu0 0.0
    %235 = vmatprep.mubr.f32.mxu0 0.0
    %236 = vmatmul.mubr.f32.gmra.mxu0 %v169
    %v237 = vpop.f32.mrf.mxu0
    %v238 = vadd.f32 %v164, %v237
    %v239 = vpop.f32.mrf.mxu0
    %240 = vdwg.mxu0
    %v241 = vlaneseq
    %v242 = vshrl.u32 %v241, 7
    %v243 = vsub.s32 0, %v242
    %v244 = vrot.slane %v56, %v243
    %v245 = vadd.f32 %v238, %v244
    %v246 = vmax.f32 %v245, 0.0
    %247 = vmatprep.subr.mxu0 0.0
    %248 = vmatpush1.msra.mxu0 %v72
    %249 = vmatprep.subr.mxu0 0.0
    %250 = vmatpush1.msra.mxu0 %v71
    %251 = vmatprep.subr.mxu0 0.0
    %252 = vmatpush1.msra.mxu0 %v70
    %253 = vmatprep.subr.mxu0 0.0
    %254 = vmatpush1.msra.mxu0 %v69
    %255 = vmatprep.subr.mxu0 0.0
    %256 = vmatpush1.msra.mxu0 %v68
    %257 = vmatprep.subr.mxu0 0.0
    %258 = vmatpush1.msra.mxu0 %v67
    %259 = vmatprep.subr.mxu0 0.0
    %260 = vmatpush1.msra.mxu0 %v66
    %261 = vmatprep.subr.mxu0 0.0
    %262 = vmatpush1.msra.mxu0 %v65
    %263 = vmatprep.subr.mxu0 0.0
    %264 = vmatpush1.msra.mxu0 %v64
    %265 = vmatprep.subr.mxu0 0.0
    %266 = vmatpush1.msra.mxu0 %v63
    %267 = vmatprep.subr.mxu0 0.0
    %268 = vmatpush1.msra.mxu0 %v62
    %269 = vmatprep.subr.mxu0 0.0
    %270 = vmatpush1.msra.mxu0 %v61
    %271 = vmatprep.subr.mxu0 0.0
    %272 = vmatpush1.msra.mxu0 %v60
    %273 = vmatprep.subr.mxu0 0.0
    %274 = vmatpush1.msra.mxu0 %v59
    %275 = vmatprep.subr.mxu0 0.0
    %276 = vmatpush1.msra.mxu0 %v58
    %277 = vmatprep.subr.mxu0 0.0
    %278 = vmatpush1.msra.mxu0 %v57
    %279 = vmatprep.subr.mxu0 0.0
    %280 = vmatpush2.msra.mxu0 0.0
    %281 = vmatprep.subr.mxu0 0.0
    %282 = vmatpush2.msra.mxu0 0.0
    %283 = vmatprep.subr.mxu0 0.0
    %284 = vmatpush2.msra.mxu0 0.0
    %285 = vmatprep.subr.mxu0 0.0
    %286 = vmatpush2.msra.mxu0 0.0
    %287 = vmatprep.subr.mxu0 0.0
    %288 = vmatpush2.msra.mxu0 0.0
    %289 = vmatprep.subr.mxu0 0.0
    %290 = vmatpush2.msra.mxu0 0.0
    %291 = vmatprep.subr.mxu0 0.0
    %292 = vmatpush2.msra.mxu0 0.0
    %293 = vmatprep.subr.mxu0 0.0
    %294 = vmatpush2.msra.mxu0 0.0
    %295 = vmatprep.subr.mxu0 0.0
    %296 = vmatpush2.msra.mxu0 0.0
    %297 = vmatprep.subr.mxu0 0.0
    %298 = vmatpush2.msra.mxu0 0.0
    %299 = vmatprep.subr.mxu0 0.0
    %300 = vmatpush2.msra.mxu0 0.0
    %301 = vmatprep.subr.mxu0 0.0
    %302 = vmatpush2.msra.mxu0 0.0
    %303 = vmatprep.subr.mxu0 0.0
    %304 = vmatpush2.msra.mxu0 0.0
    %305 = vmatprep.subr.mxu0 0.0
    %306 = vmatpush2.msra.mxu0 0.0
    %307 = vmatprep.subr.mxu0 0.0
    %308 = vmatpush2.msra.mxu0 0.0
    %309 = vmatprep.subr.mxu0 0.0
    %310 = vmatpush2.msra.mxu0 0.0
    %311 = vmatprep.mubr.f32.mxu0 0.0
    %312 = vmatmul.mubr.f32.gmra.mxu0 %v246
    %v313 = vpop.f32.mrf.mxu0
    %v314 = vadd.f32 0.0, %v313
    %v315 = vpop.f32.mrf.mxu0
    %316 = vdwg.mxu0
    %v317 = vmax.f32 %v314, 0.0
    %318 = vmatprep.subr.mxu0 0.0
    %319 = vmatpush1.msra.mxu0 %v88
    %320 = vmatprep.subr.mxu0 0.0
    %321 = vmatpush1.msra.mxu0 %v87
    %322 = vmatprep.subr.mxu0 0.0
    %323 = vmatpush1.msra.mxu0 %v86
    %324 = vmatprep.subr.mxu0 0.0
    %325 = vmatpush1.msra.mxu0 %v85
    %326 = vmatprep.subr.mxu0 0.0
    %327 = vmatpush1.msra.mxu0 %v84
    %328 = vmatprep.subr.mxu0 0.0
    %329 = vmatpush1.msra.mxu0 %v83
    %330 = vmatprep.subr.mxu0 0.0
    %331 = vmatpush1.msra.mxu0 %v82
    %332 = vmatprep.subr.mxu0 0.0
    %333 = vmatpush1.msra.mxu0 %v81
    %334 = vmatprep.subr.mxu0 0.0
    %335 = vmatpush1.msra.mxu0 %v80
    %336 = vmatprep.subr.mxu0 0.0
    %337 = vmatpush1.msra.mxu0 %v79
    %338 = vmatprep.subr.mxu0 0.0
    %339 = vmatpush1.msra.mxu0 %v78
    %340 = vmatprep.subr.mxu0 0.0
    %341 = vmatpush1.msra.mxu0 %v77
    %342 = vmatprep.subr.mxu0 0.0
    %343 = vmatpush1.msra.mxu0 %v76
    %344 = vmatprep.subr.mxu0 0.0
    %345 = vmatpush1.msra.mxu0 %v75
    %346 = vmatprep.subr.mxu0 0.0
    %347 = vmatpush1.msra.mxu0 %v74
    %348 = vmatprep.subr.mxu0 0.0
    %349 = vmatpush1.msra.mxu0 %v73
    %350 = vmatprep.subr.mxu0 0.0
    %351 = vmatpush2.msra.mxu0 0.0
    %352 = vmatprep.subr.mxu0 0.0
    %353 = vmatpush2.msra.mxu0 0.0
    %354 = vmatprep.subr.mxu0 0.0
    %355 = vmatpush2.msra.mxu0 0.0
    %356 = vmatprep.subr.mxu0 0.0
    %357 = vmatpush2.msra.mxu0 0.0
    %358 = vmatprep.subr.mxu0 0.0
    %359 = vmatpush2.msra.mxu0 0.0
    %360 = vmatprep.subr.mxu0 0.0
    %361 = vmatpush2.msra.mxu0 0.0
    %362 = vmatprep.subr.mxu0 0.0
    %363 = vmatpush2.msra.mxu0 0.0
    %364 = vmatprep.subr.mxu0 0.0
    %365 = vmatpush2.msra.mxu0 0.0
    %366 = vmatprep.subr.mxu0 0.0
    %367 = vmatpush2.msra.mxu0 0.0
    %368 = vmatprep.subr.mxu0 0.0
    %369 = vmatpush2.msra.mxu0 0.0
    %370 = vmatprep.subr.mxu0 0.0
    %371 = vmatpush2.msra.mxu0 0.0
    %372 = vmatprep.subr.mxu0 0.0
    %373 = vmatpush2.msra.mxu0 0.0
    %374 = vmatprep.subr.mxu0 0.0
    %375 = vmatpush2.msra.mxu0 0.0
    %376 = vmatprep.subr.mxu0 0.0
    %377 = vmatpush2.msra.mxu0 0.0
    %378 = vmatprep.subr.mxu0 0.0
    %379 = vmatpush2.msra.mxu0 0.0
    %380 = vmatprep.subr.mxu0 0.0
    %381 = vmatpush2.msra.mxu0 0.0
    %382 = vmatprep.mubr.f32.mxu0 0.0
    %383 = vmatmul.mubr.f32.gmra.mxu0 %v317
    %v384 = vpop.f32.mrf.mxu0
    %v385 = vadd.f32 0.0, %v384
    %v386 = vpop.f32.mrf.mxu0
    %387 = vdwg.mxu0
    %388 = vst [vmem:[#allocation8] sm:$0x3] %v385
    // Predicated region
    $region26: #{tpu_custom_call.1} parent=1 // pred_check
      _
    $region27: #{tpu_custom_call.1} parent=1 // pred_check_branch
      %390 = sbr.rel (0) target = $region29
    $region28: #{tpu_custom_call.1} parent=1 // pred_region
      %s392 = ssub.s32 32, 32
      %393 = vsyncadd [#allocation4], %s392
      %s395 = sshll.u32 [#allocation8], 4
      %s396 = int_to_ptr.vmem [resolvable:$true] %s395
      %398 = dma.vmem_to_hbm [thread:$0]  %s396, 32, %s3, [#allocation4]
    $region29: #{tpu_custom_call.1} parent=1 // pred_fallthru
      _
    // Predicated region
    $region30: #{tpu_custom_call.1} parent=1 // pred_check
      _
    $region31: #{tpu_custom_call.1} parent=1 // pred_check_branch
      %400 = sbr.rel (0) target = $region33
    $region32: #{tpu_custom_call.1} parent=1 // pred_region
      %401 = dma.done [#allocation4], 32
    $region33: #{tpu_custom_call.1} parent=1 // pred_fallthru
      _
    %402 = vsyncpa [#allocation3], 1
    %403 = vsyncpa [#allocation6], 1
    %404 = vsyncpa [#allocation4], 1

</llo_original>
